<compile_context>
chip_gen: v7x
topology: tpu7x:2x2x1
jax: 0.10.0
libtpu: 0.0.40
codegen_flags: <defaults>
</compile_context>

<pallas_src>
import functools
import math

import jax
import jax.numpy as jnp
from jax import lax
from jax.experimental import pallas as pl
from jax.experimental.pallas import tpu as pltpu

# ----------------------------------------------------------------------------
# Config (small synthetic VLM)
# ----------------------------------------------------------------------------
class CFG:
    # vision encoder (ViT, SigLIP-style: no CLS token)
    img_size = 32
    img_channels = 3
    patch = 8                    # -> 4x4 = 16 patches
    vit_hidden = 32
    vit_heads = 2
    vit_layers = 1
    vit_mlp = 64
    # modality projector
    mp_pixel_shuffle = 2         # 16 patches -> 4 image tokens, feat 32*4 = 128
    # language model decoder
    lm_hidden = 64
    lm_heads = 4
    lm_layers = 1
    lm_mlp = 128
    vocab = 128
    lm_max_len = 64
    # text
    text_len = 8


# ----------------------------------------------------------------------------
# Pallas kernels
# ----------------------------------------------------------------------------
def attn_block_kernel(x_ref, g_ref, bln_ref, qkvw_ref, qkvb_ref,
                      projw_ref, projb_ref, bias_ref, o_ref,
                      *, n_heads, scale, eps=1e-5):
    """Fused LN -> QKV -> multi-head attention -> out-proj -> residual.

    Grid is over batch; one grid step handles all heads and writes a
    lane-dense [T, D] output slab.
    """
    x = x_ref[0].astype(jnp.float32)                       # (T, D)
    T, D = x.shape
    Dh = D // n_heads

    # LayerNorm (f32 statistics)
    mu = jnp.mean(x, axis=-1, keepdims=True)
    var = jnp.mean((x - mu) ** 2, axis=-1, keepdims=True)
    h = (x - mu) * lax.rsqrt(var + eps) * g_ref[...] + bln_ref[...]

    # Fused QKV projection: bf16 MXU inputs, f32 accumulation.
    qkv = jnp.dot(h.astype(jnp.bfloat16), qkvw_ref[...],
                  preferred_element_type=jnp.float32) + qkvb_ref[...]   # (T, 3D)

    bias = bias_ref[0]                                     # (T, T) additive mask
    pw = projw_ref[...]                                    # (D, D) bf16

    acc = jnp.zeros((T, D), jnp.float32)
    for hh in range(n_heads):                              # static unroll over heads
        lo = hh * Dh
        qh = qkv[:, lo:lo + Dh]
        kh = qkv[:, D + lo:D + lo + Dh]
        vh = qkv[:, 2 * D + lo:2 * D + lo + Dh]
        # Scores: contract the head dim of q and k directly (no explicit K.T).
        s = lax.dot_general(
            qh.astype(jnp.bfloat16), kh.astype(jnp.bfloat16),
            (((1,), (1,)), ((), ())),
            preferred_element_type=jnp.float32) * scale + bias
        s = s - jnp.max(s, axis=-1, keepdims=True)
        p = jnp.exp(s)
        p = p * pl.reciprocal(jnp.sum(p, axis=-1, keepdims=True), approx=True)
        ctx = jnp.dot(p.astype(jnp.bfloat16), vh.astype(jnp.bfloat16),
                      preferred_element_type=jnp.float32)  # (T, Dh)
        # Per-head row-slice of the output projection; summing over heads is
        # identical to concat(ctx_h) @ proj_w.
        acc = acc + jnp.dot(ctx.astype(jnp.bfloat16), pw[lo:lo + Dh, :],
                            preferred_element_type=jnp.float32)

    o_ref[0] = x + acc + projb_ref[...]                    # residual fused in


def mlp_block_kernel(x_ref, g_ref, bln_ref, w1_ref, b1_ref, w2_ref, b2_ref,
                     o_ref, *, eps=1e-5):
    """Fused LN -> Linear -> GELU -> Linear -> residual."""
    x = x_ref[0].astype(jnp.float32)                       # (T, D)
    mu = jnp.mean(x, axis=-1, keepdims=True)
    var = jnp.mean((x - mu) ** 2, axis=-1, keepdims=True)
    h = (x - mu) * lax.rsqrt(var + eps) * g_ref[...] + bln_ref[...]
    h1 = jnp.dot(h.astype(jnp.bfloat16), w1_ref[...],
                 preferred_element_type=jnp.float32) + b1_ref[...]
    # GELU (tanh approximation; PyTorch nn.GELU default is the exact erf form)
    # TODO(synk): exact-erf GELU if bit-exact parity with nn.GELU() is required.
    h1 = 0.5 * h1 * (1.0 + jnp.tanh(0.7978845608028654 * (h1 + 0.044715 * h1 * h1 * h1)))
    h2 = jnp.dot(h1.astype(jnp.bfloat16), w2_ref[...],
                 preferred_element_type=jnp.float32) + b2_ref[...]
    o_ref[0] = x + h2                                      # residual fused in


def layernorm_kernel(x_ref, g_ref, b_ref, o_ref, *, eps=1e-5):
    x = x_ref[...].astype(jnp.float32)
    mu = jnp.mean(x, axis=-1, keepdims=True)
    var = jnp.mean((x - mu) ** 2, axis=-1, keepdims=True)
    o_ref[...] = (x - mu) * lax.rsqrt(var + eps) * g_ref[...] + b_ref[...]


def linear_kernel(x_ref, w_ref, b_ref, o_ref):
    # bf16 MXU inputs, f32 accumulation.
    o_ref[...] = (
        jnp.dot(x_ref[...].astype(jnp.bfloat16), w_ref[...],
                preferred_element_type=jnp.float32)
        + b_ref[...]
    )


def head_ce_kernel(x_ref, w_ref, b_ref, tgt_ref, loss_ref):
    """Fused LM head + cross-entropy: logits never leave VMEM."""
    logits = jnp.dot(x_ref[...].astype(jnp.bfloat16), w_ref[...],
                     preferred_element_type=jnp.float32) + b_ref[...]    # (M, V)
    m = jnp.max(logits, axis=-1, keepdims=True)
    lse = jnp.log(jnp.sum(jnp.exp(logits - m), axis=-1, keepdims=True)) + m
    col = lax.broadcasted_iota(jnp.int32, logits.shape, 1)
    onehot = (col == tgt_ref[...]).astype(jnp.float32)                    # tgt: (M, 1)
    tgt_logit = jnp.sum(logits * onehot, axis=-1, keepdims=True)
    loss_ref[...] = lse - tgt_logit                                       # per-token NLL
    # TODO(synk): at real vocab sizes (~49k) tile the vocab axis with an online
    # max/LSE accumulator so the [M, V] block never has to fit VMEM (v7x: 64 MiB).


# ----------------------------------------------------------------------------
# Pallas wrappers
# ----------------------------------------------------------------------------
_PARALLEL = pltpu.CompilerParams(dimension_semantics=("parallel",))


def pallas_attn_block(x, lp, n_heads, bias):
    """x: [B, T, D] f32; bias: [B, T, T] additive mask. Returns x + attn(ln(x))."""
    B, T, D = x.shape
    scale = 1.0 / math.sqrt(D // n_heads)
    return pl.pallas_call(
        functools.partial(attn_block_kernel, n_heads=n_heads, scale=scale),
        grid=(B,),
        in_specs=[
            pl.BlockSpec((1, T, D), lambda b: (b, 0, 0)),
            pl.BlockSpec((1, D), lambda b: (0, 0)),
            pl.BlockSpec((1, D), lambda b: (0, 0)),
            pl.BlockSpec((D, 3 * D), lambda b: (0, 0)),
            pl.BlockSpec((1, 3 * D), lambda b: (0, 0)),
            pl.BlockSpec((D, D), lambda b: (0, 0)),
            pl.BlockSpec((1, D), lambda b: (0, 0)),
            pl.BlockSpec((1, T, T), lambda b: (b, 0, 0)),
        ],
        out_specs=pl.BlockSpec((1, T, D), lambda b: (b, 0, 0)),
        out_shape=jax.ShapeDtypeStruct((B, T, D), jnp.float32),
        compiler_params=_PARALLEL,
    )(x.astype(jnp.float32),
      lp["ln1_g"].reshape(1, D), lp["ln1_b"].reshape(1, D),
      lp["qkv_w"], lp["qkv_b"].reshape(1, 3 * D),
      lp["proj_w"], lp["proj_b"].reshape(1, D),
      bias.astype(jnp.float32))


def pallas_mlp_block(x, lp):
    """x: [B, T, D] f32. Returns x + mlp(ln(x))."""
    B, T, D = x.shape
    H = lp["mlp_w1"].shape[1]
    return pl.pallas_call(
        mlp_block_kernel,
        grid=(B,),
        in_specs=[
            pl.BlockSpec((1, T, D), lambda b: (b, 0, 0)),
            pl.BlockSpec((1, D), lambda b: (0, 0)),
            pl.BlockSpec((1, D), lambda b: (0, 0)),
            pl.BlockSpec((D, H), lambda b: (0, 0)),
            pl.BlockSpec((1, H), lambda b: (0, 0)),
            pl.BlockSpec((H, D), lambda b: (0, 0)),
            pl.BlockSpec((1, D), lambda b: (0, 0)),
        ],
        out_specs=pl.BlockSpec((1, T, D), lambda b: (b, 0, 0)),
        out_shape=jax.ShapeDtypeStruct((B, T, D), jnp.float32),
        compiler_params=_PARALLEL,
    )(x.astype(jnp.float32),
      lp["ln2_g"].reshape(1, D), lp["ln2_b"].reshape(1, D),
      lp["mlp_w1"], lp["mlp_b1"].reshape(1, H),
      lp["mlp_w2"], lp["mlp_b2"].reshape(1, D))


def pallas_linear(x, w, b=None):
    """x: [..., K] @ w(bf16): [K, N] + b -> [..., N] (f32 accumulate)."""
    K = x.shape[-1]
    N = w.shape[1]
    x2 = x.reshape(-1, K).astype(jnp.float32)
    M = x2.shape[0]
    if b is None:
        b = jnp.zeros((N,), jnp.float32)
    # TODO(synk): row-tile (TILE_M ~ 256-512) with a parallel grid once M is non-toy.
    out = pl.pallas_call(
        linear_kernel,
        grid=(1,),
        in_specs=[
            pl.BlockSpec((M, K), lambda i: (0, 0)),
            pl.BlockSpec((K, N), lambda i: (0, 0)),
            pl.BlockSpec((1, N), lambda i: (0, 0)),
        ],
        out_specs=pl.BlockSpec((M, N), lambda i: (0, 0)),
        out_shape=jax.ShapeDtypeStruct((M, N), jnp.float32),
    )(x2, w.astype(jnp.bfloat16), b.reshape(1, N).astype(jnp.float32))
    return out.reshape(x.shape[:-1] + (N,))


def pallas_layernorm(x, g, b):
    D = x.shape[-1]
    x2 = x.reshape(-1, D).astype(jnp.float32)
    M = x2.shape[0]
    out = pl.pallas_call(
        layernorm_kernel,
        grid=(1,),
        in_specs=[
            pl.BlockSpec((M, D), lambda i: (0, 0)),
            pl.BlockSpec((1, D), lambda i: (0, 0)),
            pl.BlockSpec((1, D), lambda i: (0, 0)),
        ],
        out_specs=pl.BlockSpec((M, D), lambda i: (0, 0)),
        out_shape=jax.ShapeDtypeStruct((M, D), jnp.float32),
    )(x2, g.reshape(1, D), b.reshape(1, D))
    return out.reshape(x.shape)


def pallas_head_ce(x, w, b, targets):
    """Fused LM head + CE. x: [M, D], w: [D, V] bf16, targets: [M] -> scalar mean NLL."""
    M, D = x.shape
    V = w.shape[1]
    per_tok = pl.pallas_call(
        head_ce_kernel,
        grid=(1,),
        in_specs=[
            pl.BlockSpec((M, D), lambda i: (0, 0)),
            pl.BlockSpec((D, V), lambda i: (0, 0)),
            pl.BlockSpec((1, V), lambda i: (0, 0)),
            pl.BlockSpec((M, 1), lambda i: (0, 0)),
        ],
        out_specs=pl.BlockSpec((M, 1), lambda i: (0, 0)),
        out_shape=jax.ShapeDtypeStruct((M, 1), jnp.float32),
    )(x.astype(jnp.float32), w.astype(jnp.bfloat16),
      b.reshape(1, V).astype(jnp.float32), targets.reshape(M, 1).astype(jnp.int32))
    return jnp.mean(per_tok)


# ----------------------------------------------------------------------------
# Model pieces (parameter init + forward glue)
# ----------------------------------------------------------------------------
def _dense(key, shape, scale=0.02):
    return scale * jax.random.normal(key, shape, dtype=jnp.float32)


def init_block(key, dim, mlp_dim):
    ks = jax.random.split(key, 4)
    # Matmul weights stored in bf16 (MXU inputs); LN params and biases in f32.
    return dict(
        ln1_g=jnp.ones((dim,), jnp.float32), ln1_b=jnp.zeros((dim,), jnp.float32),
        qkv_w=_dense(ks[0], (dim, 3 * dim)).astype(jnp.bfloat16),
        qkv_b=jnp.zeros((3 * dim,), jnp.float32),
        proj_w=_dense(ks[1], (dim, dim)).astype(jnp.bfloat16),
        proj_b=jnp.zeros((dim,), jnp.float32),
        ln2_g=jnp.ones((dim,), jnp.float32), ln2_b=jnp.zeros((dim,), jnp.float32),
        mlp_w1=_dense(ks[2], (dim, mlp_dim)).astype(jnp.bfloat16),
        mlp_b1=jnp.zeros((mlp_dim,), jnp.float32),
        mlp_w2=_dense(ks[3], (mlp_dim, dim)).astype(jnp.bfloat16),
        mlp_b2=jnp.zeros((dim,), jnp.float32),
    )


def init_params(key, cfg):
    k = jax.random.split(key, 16)
    n_patches = (cfg.img_size // cfg.patch) ** 2
    patch_in = cfg.img_channels * cfg.patch * cfg.patch
    mp_in = cfg.vit_hidden * cfg.mp_pixel_shuffle ** 2
    vit_layers = [init_block(kk, cfg.vit_hidden, cfg.vit_mlp)
                  for kk in jax.random.split(k[4], cfg.vit_layers)]
    lm_layers = [init_block(kk, cfg.lm_hidden, cfg.lm_mlp)
                 for kk in jax.random.split(k[5], cfg.lm_layers)]
    return dict(
        vit=dict(
            patch_w=_dense(k[0], (patch_in, cfg.vit_hidden)).astype(jnp.bfloat16),
            patch_b=jnp.zeros((cfg.vit_hidden,), jnp.float32),
            pos_emb=_dense(k[1], (n_patches, cfg.vit_hidden)),
            layers=vit_layers,
            lnf_g=jnp.ones((cfg.vit_hidden,), jnp.float32),
            lnf_b=jnp.zeros((cfg.vit_hidden,), jnp.float32),
        ),
        mp=dict(w=_dense(k[2], (mp_in, cfg.lm_hidden)).astype(jnp.bfloat16)),
        lm=dict(
            tok_emb=_dense(k[3], (cfg.vocab, cfg.lm_hidden)),
            pos_emb=_dense(k[6], (cfg.lm_max_len, cfg.lm_hidden)),
            layers=lm_layers,
            lnf_g=jnp.ones((cfg.lm_hidden,), jnp.float32),
            lnf_b=jnp.zeros((cfg.lm_hidden,), jnp.float32),
            head_w=_dense(k[7], (cfg.lm_hidden, cfg.vocab)).astype(jnp.bfloat16),
            head_b=jnp.zeros((cfg.vocab,), jnp.float32),
        ),
    )


def transformer_block(x, lp, n_heads, bias):
    x = pallas_attn_block(x, lp, n_heads, bias)   # residual fused inside kernel
    x = pallas_mlp_block(x, lp)                   # residual fused inside kernel
    return x


def vit_forward(vp, image, cfg):
    B, C, H, W = image.shape
    p = cfg.patch
    # Conv2d(kernel=stride=patch) == unfold into [B, n_patches, C*p*p] @ W
    x = image.reshape(B, C, H // p, p, W // p, p)
    x = x.transpose(0, 2, 4, 1, 3, 5).reshape(B, (H // p) * (W // p), C * p * p)
    x = pallas_linear(x, vp["patch_w"], vp["patch_b"])
    x = x + vp["pos_emb"][None]
    T = x.shape[1]
    bias = jnp.zeros((B, T, T), jnp.float32)               # no masking in ViT
    for lp in vp["layers"]:
        x = transformer_block(x, lp, cfg.vit_heads, bias)
    return pallas_layernorm(x, vp["lnf_g"], vp["lnf_b"])


def mp_forward(mpp, x, cfg):
    # pixel shuffle: [B, S*S, D] -> [B, (S/f)^2, D*f^2], then linear (no bias)
    B, N, D = x.shape
    f = cfg.mp_pixel_shuffle
    S = int(math.isqrt(N))
    x = x.reshape(B, S // f, f, S // f, f, D)
    x = x.transpose(0, 1, 3, 2, 4, 5).reshape(B, (S // f) * (S // f), D * f * f)
    return pallas_linear(x, mpp["w"])


def lm_forward(lp, x, attn_mask, cfg):
    B, T, D = x.shape
    x = x + lp["pos_emb"][:T][None]
    causal = jnp.tril(jnp.ones((T, T), jnp.float32))
    allowed = causal[None] * attn_mask.astype(jnp.float32)[:, None, :]   # [B, T, T]
    bias = jnp.where(allowed > 0, 0.0, -1e9).astype(jnp.float32)         # [B, T, T]
    for blk in lp["layers"]:
        x = transformer_block(x, blk, cfg.lm_heads, bias)
    return pallas_layernorm(x, lp["lnf_g"], lp["lnf_b"])


def vlm_forward(params, input_ids, image, attention_mask, targets, cfg):
    image_embeds = vit_forward(params["vit"], image, cfg)          # [B, 16, Dv]
    image_embeds = mp_forward(params["mp"], image_embeds, cfg)     # [B, 4, Dl]
    B, img_len, _ = image_embeds.shape

    token_embds = params["lm"]["tok_emb"][input_ids]               # gather (glue)
    combined = jnp.concatenate([image_embeds, token_embds], axis=1)

    if attention_mask is not None:
        image_mask = jnp.ones((B, img_len), dtype=attention_mask.dtype)
        attention_mask = jnp.concatenate([image_mask, attention_mask], axis=1)
    else:
        attention_mask = jnp.ones((B, combined.shape[1]), dtype=jnp.int32)

    lm_out = lm_forward(params["lm"], combined, attention_mask, cfg)

    loss = None
    if targets is not None:
        # Head applied only to text positions, fused with cross-entropy.
        lm_text = lm_out[:, img_len:, :]                           # [B, text_len, D]
        loss = pallas_head_ce(
            lm_text.reshape(-1, lm_text.shape[-1]),
            params["lm"]["head_w"], params["lm"]["head_b"],
            targets.reshape(-1))
    return lm_out, loss


# ----------------------------------------------------------------------------
if __name__ == "__main__":
    cfg = CFG()
    key = jax.random.PRNGKey(0)
    kp, ki, kx, kt = jax.random.split(key, 4)

    params = init_params(kp, cfg)

    B = 2
    image = jax.random.normal(
        kx, (B, cfg.img_channels, cfg.img_size, cfg.img_size), dtype=jnp.float32)
    input_ids = jax.random.randint(ki, (B, cfg.text_len), 0, cfg.vocab, dtype=jnp.int32)
    targets = jax.random.randint(kt, (B, cfg.text_len), 0, cfg.vocab, dtype=jnp.int32)
    attention_mask = jnp.ones((B, cfg.text_len), dtype=jnp.int32)
    attention_mask = attention_mask.at[1, -2:].set(0)   # some padding for realism

    lm_out, loss = vlm_forward(params, input_ids, image, attention_mask, targets, cfg)
    jax.block_until_ready((lm_out, loss))

    assert lm_out.shape == (B, 4 + cfg.text_len, cfg.lm_hidden)
    assert loss.shape == () and bool(jnp.isfinite(loss))
    print("KERNEL_OK")
</pallas_src>

<mosaic_0001>
module attributes {stable_mosaic.version = 11 : i64} {
  func.func @linear_kernel(%arg0: i32, %arg1: memref<32x192xf32, #tpu.memory_space<vmem>>, %arg2: memref<192x32xbf16, #tpu.memory_space<vmem>>, %arg3: memref<1x32xf32, #tpu.memory_space<vmem>>, %arg4: memref<32x32xf32, #tpu.memory_space<vmem>>) attributes {dimension_semantics = [#tpu.dimension_semantics<arbitrary>], iteration_bounds = array<i64: 1>, scalar_prefetch = 0 : i64, scratch_operands = 0 : i64, tpu.core_type = #tpu.core_type<tc>, window_params = [{pipeline_mode = #tpu.pipeline_mode<synchronous>, transform_indices = @transform_0, window_bounds = array<i64: 32, 192>}, {pipeline_mode = #tpu.pipeline_mode<synchronous>, transform_indices = @transform_1, window_bounds = array<i64: 192, 32>}, {pipeline_mode = #tpu.pipeline_mode<synchronous>, transform_indices = @transform_2, window_bounds = array<i64: 1, 32>}, {pipeline_mode = #tpu.pipeline_mode<synchronous>, transform_indices = @transform_3, window_bounds = array<i64: 32, 32>}]} {
    %c0 = arith.constant 0 : index
    %c0_0 = arith.constant 0 : index
    %0 = vector.load %arg1[%c0, %c0_0] : memref<32x192xf32, #tpu.memory_space<vmem>>, vector<32x192xf32>
    %1 = arith.truncf %0 : vector<32x192xf32> to vector<32x192xbf16>
    %c0_1 = arith.constant 0 : index
    %c0_2 = arith.constant 0 : index
    %2 = vector.load %arg2[%c0_1, %c0_2] : memref<192x32xbf16, #tpu.memory_space<vmem>>, vector<192x32xbf16>
    %cst = arith.constant dense<0.000000e+00> : vector<32x32xf32>
    %3 = tpu.matmul %1, %2, %cst {dimension_numbers = #tpu.dot_dimension_numbers<[1], [0], [0], [1], [0, 0, 1, 1], [], []>} : vector<32x192xbf16>, vector<192x32xbf16>, vector<32x32xf32> -> vector<32x32xf32>
    %c0_3 = arith.constant 0 : index
    %c0_4 = arith.constant 0 : index
    %4 = vector.load %arg3[%c0_3, %c0_4] : memref<1x32xf32, #tpu.memory_space<vmem>>, vector<1x32xf32>
    %5 = vector.broadcast %4 : vector<1x32xf32> to vector<32x32xf32>
    %6 = arith.addf %3, %5 : vector<32x32xf32>
    %c0_5 = arith.constant 0 : index
    %c0_6 = arith.constant 0 : index
    %7 = vector.load %arg4[%c0_5, %c0_6] : memref<32x32xf32, #tpu.memory_space<vmem>>, vector<32x32xf32>
    tpu.vector_store %arg4[%c0_5, %c0_6], %6 {strides = array<i32>} : memref<32x32xf32, #tpu.memory_space<vmem>>, vector<32x32xf32>,
    return
  }
  func.func @transform_0(%arg0: i32) -> (i32, i32) {
    %c0_i32 = arith.constant 0 : i32
    %c0_i32_0 = arith.constant 0 : i32
    %c0_i32_1 = arith.constant 0 : i32
    return %c0_i32, %c0_i32_0 : i32, i32
  }
  func.func @transform_1(%arg0: i32) -> (i32, i32) {
    %c0_i32 = arith.constant 0 : i32
    %c0_i32_0 = arith.constant 0 : i32
    %c0_i32_1 = arith.constant 0 : i32
    return %c0_i32, %c0_i32_0 : i32, i32
  }
  func.func @transform_2(%arg0: i32) -> (i32, i32) {
    %c0_i32 = arith.constant 0 : i32
    %c0_i32_0 = arith.constant 0 : i32
    %c0_i32_1 = arith.constant 0 : i32
    return %c0_i32, %c0_i32_0 : i32, i32
  }
  func.func @transform_3(%arg0: i32) -> (i32, i32) {
    %c0_i32 = arith.constant 0 : i32
    %c0_i32_0 = arith.constant 0 : i32
    %c0_i32_1 = arith.constant 0 : i32
    return %c0_i32, %c0_i32_0 : i32, i32
  }
}

</mosaic_0001>

<llo_original>
// kernel: tpu_custom_call.1
$region0: #{tpu_custom_call.1}
  #allocation0 [shape = 'u32[]', space=smem, size = 0x4, offset = 0x4, fixed_abs, tag = 'smem constant byte address 0x4 - core index']
  #allocation1 [shape = 'u32[144,128]{1,0:T(1,128)}', space=vmem, size = 0x12000, scoped, tag = 'internal scratch']
  %s0 = inlined_call_operand.vmem [shape: f32[32,192], index: 0, kind: input, shape index: {}]
  %s1 = inlined_call_operand.vmem [shape: bf16[192,32], index: 1, kind: input, shape index: {}]
  %s2 = inlined_call_operand.vmem [shape: f32[1,32], index: 2, kind: input, shape index: {}]
  %s3 = inlined_call_operand.hbm [shape: f32[32,32], index: 3, kind: output, shape index: {}]
  %s4 = sld [smem:[#allocation0]]
  $region22: #{tpu_custom_call.1} parent=0
    _
  %s6 = ssub.s32 1, %s4
  %s7 = scalar_select 0, %s6, %s4
  $region1: #{tpu_custom_call.1} parent=0
    #allocation2 [shape = 'u8[16384]{0}', space=vmem, size = 0x4000, scoped, tag = 'output window, operand 0, single buffered']
    #allocation3 [shape = 's32[1]{0}', space=sflag, size = 0x4, scoped, tag = 'scoped memory for tpu_custom_call.1']
    %8 = vsyncpa [#allocation3], 0
    // Predicated region
    $region2: #{tpu_custom_call.1} parent=1 // pred_check
      _
    $region3: #{tpu_custom_call.1} parent=1 // pred_check_branch
      %10 = sbr.rel (0) target = $region5
    $region4: #{tpu_custom_call.1} parent=1 // pred_region
      _
    $region5: #{tpu_custom_call.1} parent=1 // pred_fallthru
      _
    // Predicated region
    $region6: #{tpu_custom_call.1} parent=1 // pred_check
      _
    $region7: #{tpu_custom_call.1} parent=1 // pred_check_branch
      %12 = sbr.rel (0) target = $region9
    $region8: #{tpu_custom_call.1} parent=1 // pred_region
      _
    $region9: #{tpu_custom_call.1} parent=1 // pred_fallthru
      _
    // Predicated region
    $region10: #{tpu_custom_call.1} parent=1 // pred_check
      _
    $region11: #{tpu_custom_call.1} parent=1 // pred_check_branch
      %14 = sbr.rel (0) target = $region13
    $region12: #{tpu_custom_call.1} parent=1 // pred_region
      _
    $region13: #{tpu_custom_call.1} parent=1 // pred_fallthru
      _
    %v16 = vld [vmem:[%s0] sm:$0xff]
    %v17 = vld [vmem:[%s0 + $0x8] sm:$0xff]
    %v18 = vld [vmem:[%s0 + $0x10] sm:$0xff]
    %v19 = vld [vmem:[%s0 + $0x18] sm:$0xff]
    %v20 = vld [vmem:[%s0 + $0x20] sm:$0xff]
    %v21 = vld [vmem:[%s0 + $0x28] sm:$0xff]
    %v22 = vld [vmem:[%s0 + $0x30] sm:$0xff]
    %v23 = vld [vmem:[%s0 + $0x38] sm:$0xff]
    %v24 = vpack.c.bf16 %v18, %v16
    %v25 = vpack.c.bf16 %v19, %v17
    %v26 = vpack.c.bf16 %v22, %v20
    %v27 = vpack.c.bf16 %v23, %v21
    %v28 = vld [vmem:[%s1] sm:$0xf]
    %v29 = vld [vmem:[%s1 + $0x4] sm:$0xf]
    %v30 = vld [vmem:[%s1 + $0x8] sm:$0xf]
    %v31 = vld [vmem:[%s1 + $0xc] sm:$0xf]
    %v32 = vld [vmem:[%s1 + $0x10] sm:$0xf]
    %v33 = vld [vmem:[%s1 + $0x14] sm:$0xf]
    %v34 = vld [vmem:[%s1 + $0x18] sm:$0xf]
    %v35 = vld [vmem:[%s1 + $0x1c] sm:$0xf]
    %v36 = vld [vmem:[%s1 + $0x20] sm:$0xf]
    %v37 = vld [vmem:[%s1 + $0x24] sm:$0xf]
    %v38 = vld [vmem:[%s1 + $0x28] sm:$0xf]
    %v39 = vld [vmem:[%s1 + $0x2c] sm:$0xf]
    %v40 = vld [vmem:[%s1 + $0x30] sm:$0xf]
    %v41 = vld [vmem:[%s1 + $0x34] sm:$0xf]
    %v42 = vld [vmem:[%s1 + $0x38] sm:$0xf]
    %v43 = vld [vmem:[%s1 + $0x3c] sm:$0xf]
    %v44 = vld [vmem:[%s1 + $0x40] sm:$0xf]
    %v45 = vld [vmem:[%s1 + $0x44] sm:$0xf]
    %v46 = vld [vmem:[%s1 + $0x48] sm:$0xf]
    %v47 = vld [vmem:[%s1 + $0x4c] sm:$0xf]
    %v48 = vld [vmem:[%s1 + $0x50] sm:$0xf]
    %v49 = vld [vmem:[%s1 + $0x54] sm:$0xf]
    %v50 = vld [vmem:[%s1 + $0x58] sm:$0xf]
    %v51 = vld [vmem:[%s1 + $0x5c] sm:$0xf]
    %v52 = vld [vmem:[%s2] sm:$0x1]
    %v54 = vlaneseq
    %v55 = vshrl.u32 %v54, 7
    %v56 = vsub.s32 0, %v55
    %v57 = vrot.slane %v52, %v56
    %v83 = vunpack.c.l.b16 %v28
    %v84 = vunpack.c.l.b16 %v29
    %v85 = vunpack.c.l.b16 %v30
    %v86 = vunpack.c.l.b16 %v31
    %v87 = vunpack.c.l.b16 %v32
    %v88 = vunpack.c.l.b16 %v33
    %v89 = vunpack.c.l.b16 %v34
    %v90 = vunpack.c.l.b16 %v35
    %v91 = vunpack.c.l.b16 %v36
    %v92 = vunpack.c.l.b16 %v37
    %v93 = vunpack.c.l.b16 %v38
    %v94 = vunpack.c.l.b16 %v39
    %v95 = vunpack.c.l.b16 %v40
    %v96 = vunpack.c.l.b16 %v41
    %v97 = vunpack.c.l.b16 %v42
    %v98 = vunpack.c.l.b16 %v43
    %v99 = vunpack.c.l.b16 %v44
    %v100 = vunpack.c.l.b16 %v45
    %v101 = vunpack.c.l.b16 %v46
    %v102 = vunpack.c.l.b16 %v47
    %v103 = vunpack.c.l.b16 %v48
    %v104 = vunpack.c.l.b16 %v49
    %v105 = vunpack.c.l.b16 %v50
    %v106 = vunpack.c.l.b16 %v51
    %v107 = vpack.c.b16 %v84, %v83
    %v108 = vpack.c.b16 %v86, %v85
    %v109 = vpack.c.b16 %v88, %v87
    %v110 = vpack.c.b16 %v90, %v89
    %v111 = vpack.c.b16 %v92, %v91
    %v112 = vpack.c.b16 %v94, %v93
    %v113 = vpack.c.b16 %v96, %v95
    %v114 = vpack.c.b16 %v98, %v97
    %v115 = vpack.c.b16 %v100, %v99
    %v116 = vpack.c.b16 %v102, %v101
    %v117 = vpack.c.b16 %v104, %v103
    %v118 = vpack.c.b16 %v106, %v105
    %vm131 = vcmask 523264
    %v133 = vsel %vm131, %v25, 0
    %v136 = vsel %vm131, %v27, 0
    %138 = vmatprep.subr.bf16.mxu0 0
    %139 = vmatpush1.bf16.msra.mxu0 %v107
    %140 = vmatprep.subr.bf16.mxu0 0
    %141 = vmatpush1.bf16.msra.mxu0 %v108
    %142 = vmatprep.subr.bf16.mxu0 0
    %143 = vmatpush1.bf16.msra.mxu0 %v109
    %144 = vmatprep.subr.bf16.mxu0 0
    %145 = vmatpush1.bf16.msra.mxu0 %v110
    %146 = vmatprep.subr.bf16.mxu0 0
    %147 = vmatpush1.bf16.msra.mxu0 %v111
    %148 = vmatprep.subr.bf16.mxu0 0
    %149 = vmatpush1.bf16.msra.mxu0 %v112
    %150 = vmatprep.subr.bf16.mxu0 0
    %151 = vmatpush1.bf16.msra.mxu0 %v113
    %152 = vmatprep.subr.bf16.mxu0 0
    %153 = vmatpush1.bf16.msra.mxu0 %v114
    %154 = vmatprep.subr.bf16.mxu0 0
    %155 = vmatpush1.bf16.msra.mxu0 %v115
    %156 = vmatprep.subr.bf16.mxu0 0
    %157 = vmatpush1.bf16.msra.mxu0 %v116
    %158 = vmatprep.subr.bf16.mxu0 0
    %159 = vmatpush1.bf16.msra.mxu0 %v117
    %160 = vmatprep.subr.bf16.mxu0 0
    %161 = vmatpush1.bf16.msra.mxu0 %v118
    %162 = vmatprep.subr.bf16.mxu0 0
    %163 = vmatpush1.bf16.msra.mxu0 0
    %164 = vmatprep.subr.bf16.mxu0 0
    %165 = vmatpush1.bf16.msra.mxu0 0
    %166 = vmatprep.subr.bf16.mxu0 0
    %167 = vmatpush1.bf16.msra.mxu0 0
    %168 = vmatprep.subr.bf16.mxu0 0
    %169 = vmatpush1.bf16.msra.mxu0 0
    %170 = vmatprep.mubr.bf16.mxu0 %v133
    %171 = vmatmul.mubr.bf16.gmra.mrb[0].mxu0 %v24
    %v172 = vpop.f32.mrb[0].mxu0
    %v173 = vadd.f32 %v57, %v172
    %v174 = vpop.f32.mrb[0].mxu0
    %v175 = vpop.f32.mrb[0].mxu0
    %v176 = vadd.f32 %v57, %v175
    %v177 = vpop.f32.mrb[0].mxu0
    %178 = vmatprep.mubr.bf16.mxu0 %v136
    %179 = vmatmul.mubr.bf16.gmra.mrb[0].mxu0 %v26
    %v180 = vpop.f32.mrb[0].mxu0
    %v181 = vadd.f32 %v57, %v180
    %v182 = vpop.f32.mrb[0].mxu0
    %v183 = vpop.f32.mrb[0].mxu0
    %v184 = vadd.f32 %v57, %v183
    %v185 = vpop.f32.mrb[0].mxu0
    %186 = vdwg.mxu0
    %vm187 = vcmask 261120
    %188 = vst.msk [vmem:[#allocation2] sm:$0xff] %vm187, %v173
    %189 = vst.msk [vmem:[#allocation2 + $0x8] sm:$0xff] %vm187, %v176
    %190 = vst.msk [vmem:[#allocation2 + $0x10] sm:$0xff] %vm187, %v181
    %191 = vst.msk [vmem:[#allocation2 + $0x18] sm:$0xff] %vm187, %v184
    // Predicated region
    $region14: #{tpu_custom_call.1} parent=1 // pred_check
      _
    $region15: #{tpu_custom_call.1} parent=1 // pred_check_branch
      %193 = sbr.rel (0) target = $region17
    $region16: #{tpu_custom_call.1} parent=1 // pred_region
      %s195 = ssub.s32 512, 512
      %196 = vsyncadd [#allocation3], %s195
      %s197 = sshll.u32 [#allocation2], 4
      %s198 = int_to_ptr.vmem [resolvable:$true] %s197
      %203 = dma.vmem_to_hbm [thread:$0]  %s198, 512, %s3, [#allocation3], 128, 128, 8
    $region17: #{tpu_custom_call.1} parent=1 // pred_fallthru
      _
    // Predicated region
    $region18: #{tpu_custom_call.1} parent=1 // pred_check
      _
    $region19: #{tpu_custom_call.1} parent=1 // pred_check_branch
      %205 = sbr.rel (0) target = $region21
    $region20: #{tpu_custom_call.1} parent=1 // pred_region
      %206 = dma.done [#allocation3], 512
    $region21: #{tpu_custom_call.1} parent=1 // pred_fallthru
      _
    %207 = vsyncpa [#allocation3], 1

</llo_original>
